<compile_context>
chip_gen: v5e
topology: v5e:2x2
jax: 0.10.0
libtpu: 0.0.40
codegen_flags: <defaults>
</compile_context>

<pallas_src>
import functools

import jax
import jax.numpy as jnp
from jax.experimental import pallas as pl
from jax.experimental.pallas import tpu as pltpu

_P = 64  # width of the hidden projection in the PyTorch module


def _round_up(n, m):
    return (n + m - 1) // m * m


def _self_attention_kernel(x_ref, w1_ref, b1_ref, w2_ref, out_ref, wts_ref,
                           *, t_valid):
    # x_ref:   (block_b, T_pad, H)   block of batch rows
    # w1_ref:  (H, P)                first Linear weight (bf16 or f32)
    # b1_ref:  (1, P)                first Linear bias (f32)
    # w2_ref:  (1, P)                second Linear weight as a lane-dense row
    # out_ref: (block_b, H)
    # wts_ref: (block_b, T_pad)
    b_blk, t_pad, h_dim = x_ref.shape
    p_dim = w1_ref.shape[1]

    # --- Linear(H, P) + ReLU over all block_b*T rows (one MXU matmul) -------
    # cast to the (bf16) weight dtype right at the dot; accumulate in f32.
    x2 = x_ref[...].reshape(b_blk * t_pad, h_dim)
    h = jnp.dot(x2.astype(w1_ref.dtype), w1_ref[...],
                preferred_element_type=jnp.float32)
    h = jnp.maximum(h + b1_ref[...], 0.0)                    # (b*t, P) f32

    # --- Linear(P, 1): VPU multiply + lane reduction (avoid an N=1 matmul) --
    e = jnp.sum(h.reshape(b_blk, t_pad, p_dim) * w2_ref[...], axis=-1)
    # NOTE: the scalar bias b2 of the second Linear is intentionally dropped:
    # softmax is shift invariant, so it cannot change weights or outputs.

    if t_pad != t_valid:
        # mask padded sequence positions out of the softmax
        pos = jax.lax.broadcasted_iota(jnp.int32, (b_blk, t_pad), 1)
        e = jnp.where(pos < t_valid, e, -1e30)

    # --- softmax over the sequence axis (lane axis of e) --------------------
    m = jnp.max(e, axis=-1, keepdims=True)                   # (block_b, 1)
    p = jnp.exp(e - m)                                        # (block_b, T_pad)
    s = jnp.sum(p, axis=-1, keepdims=True)                    # (block_b, 1)
    w = p / s                            # exact reciprocal: weights sum to 1

    # --- weighted sum over T: VPU multiply + sublane (XLU) reduction --------
    # (an M=1/q=1 MXU contraction would waste nearly all MXU rows + relayout)
    out = jnp.sum(x_ref[...] * w[:, :, None], axis=1)        # (block_b, H)

    out_ref[...] = out.astype(out_ref.dtype)
    wts_ref[...] = w.astype(wts_ref.dtype)


def self_attention(x, w1, b1, w2, b2=None, *, block_b=None, use_bf16=True):
    """Pallas TPU SelfAttention forward.

    x:  (B, T, H) float32 encoder outputs
    w1: (H, P), b1: (P,)   -- first Linear (P = 64)
    w2: (P, 1), b2: (1,)   -- second Linear (b2 is a softmax-shift no-op)
    Returns (outputs (B, H), weights (B, T)).
    """
    B, T, H = x.shape
    P = w1.shape[1]
    del b2  # softmax shift invariance: adding a scalar to every logit is a no-op

    # --- pad T to a sublane multiple so (b,T,H)<->(b*T,H) reshape is free ----
    T_pad = _round_up(T, 8)
    if T_pad != T:
        x = jnp.pad(x, ((0, 0), (0, T_pad - T), (0, 0)))

    # --- generation-aware VMEM budget ----------------------------------------
    try:
        vmem_cap = int(getattr(pltpu.get_tpu_info(), "vmem_capacity_bytes",
                               64 * 1024 * 1024))
    except Exception:
        vmem_cap = 64 * 1024 * 1024          # v7x-conservative fallback
    vmem_cap = max(vmem_cap, 32 * 1024 * 1024)

    x_it = x.dtype.itemsize
    if block_b is None:
        # per-batch-row VMEM: double-buffered x tile + f32 projection
        # intermediate (scratch/spill) + double-buffered out/wts rows.
        row_bytes = (2 * T_pad * H * x_it
                     + 2 * T_pad * P * 4
                     + 2 * (H + T_pad) * 4)
        cap_vmem = (vmem_cap // 2) // max(1, row_bytes)       # keep headroom
        cap_tile = (8 * 1024 * 1024) // max(1, T_pad * H * x_it)  # <=8MiB x tile
        block_b = max(8, min(cap_vmem, cap_tile))
        if B >= 16:
            # prefer >=2 grid steps so "parallel" can shard across 2 TCs (v7x)
            block_b = min(block_b, _round_up(pl.cdiv(B, 2), 8))
        block_b = max(8, (block_b // 8) * 8)
        block_b = min(block_b, _round_up(B, 8))
    else:
        block_b = max(8, _round_up(block_b, 8))

    grid_b = pl.cdiv(B, block_b)
    B_pad = grid_b * block_b
    if B_pad != B:
        # zero-padded batch rows produce finite (uniform-softmax) garbage rows
        # that are sliced off below.
        x = jnp.pad(x, ((0, B_pad - B), (0, 0), (0, 0)))

    mat_dtype = jnp.bfloat16 if use_bf16 else x.dtype
    w1_m = w1.astype(mat_dtype)                      # MXU is bf16-native
    b1_2d = b1.reshape(1, P).astype(jnp.float32)
    w2_row = w2.reshape(1, P).astype(jnp.float32)    # (P,1) -> lane-dense row

    kernel = functools.partial(_self_attention_kernel, t_valid=T)

    out_shapes = (
        jax.ShapeDtypeStruct((B_pad, H), x.dtype),
        jax.ShapeDtypeStruct((B_pad, T_pad), x.dtype),
    )

    outputs, weights = pl.pallas_call(
        kernel,
        out_shape=out_shapes,
        grid_spec=pltpu.PrefetchScalarGridSpec(
            num_scalar_prefetch=0,
            grid=(grid_b,),
            in_specs=[
                pl.BlockSpec((block_b, T_pad, H), lambda i: (i, 0, 0)),  # x
                pl.BlockSpec((H, P), lambda i: (0, 0)),                  # w1
                pl.BlockSpec((1, P), lambda i: (0, 0)),                  # b1
                pl.BlockSpec((1, P), lambda i: (0, 0)),                  # w2
            ],
            out_specs=[
                pl.BlockSpec((block_b, H), lambda i: (i, 0)),            # out
                pl.BlockSpec((block_b, T_pad), lambda i: (i, 0)),        # wts
            ],
        ),
        compiler_params=pltpu.CompilerParams(
            dimension_semantics=("parallel",),
            vmem_limit_bytes=int(min(0.75 * vmem_cap, 96 * 1024 * 1024)),
        ),
    )(x, w1_m, b1_2d, w2_row)

    return outputs[:B], weights[:B, :T]


def reference(x, w1, b1, w2, b2):
    h = jnp.maximum(x @ w1 + b1, 0.0)          # (B, T, 64)
    e = (h @ w2)[..., 0] + b2[0]               # (B, T)
    w = jax.nn.softmax(e, axis=1)              # (B, T)
    out = jnp.sum(x * w[..., None], axis=1)    # (B, H)
    return out, w


if __name__ == "__main__":
    B, T, H = 2, 8, 32    # small (batch, seq, hidden) consistent with the module

    key = jax.random.PRNGKey(0)
    kx, k1, k2, k3, k4 = jax.random.split(key, 5)

    x = jax.random.normal(kx, (B, T, H), dtype=jnp.float32)

    # deterministic synthetic parameters (not a checkpoint load)
    w1 = jax.random.normal(k1, (H, 64), dtype=jnp.float32) * 0.1
    b1 = jax.random.normal(k2, (64,), dtype=jnp.float32) * 0.1
    w2 = jax.random.normal(k3, (64, 1), dtype=jnp.float32) * 0.1
    b2 = jax.random.normal(k4, (1,), dtype=jnp.float32) * 0.1

    outputs, weights = self_attention(x, w1, b1, w2, b2)
    outputs, weights = jax.block_until_ready((outputs, weights))

    ref_out, ref_w = reference(x, w1, b1, w2, b2)
    # tolerance accounts for bf16 MXU inputs on the Linear(H,64) projection
    # (accumulation and softmax stay f32)
    assert jnp.allclose(outputs, ref_out, atol=1e-2, rtol=1e-2), \
        float(jnp.max(jnp.abs(outputs - ref_out)))
    assert jnp.allclose(weights, ref_w, atol=1e-2, rtol=1e-2), \
        float(jnp.max(jnp.abs(weights - ref_w)))
    # softmax weights use an exact reciprocal -> rows sum to 1
    assert jnp.allclose(jnp.sum(weights, axis=1), 1.0, atol=1e-5)

    print("KERNEL_OK")
</pallas_src>

<mosaic_0001>
module attributes {stable_mosaic.version = 11 : i64} {
  func.func @_self_attention_kernel(%arg0: i32, %arg1: memref<8x8x32xf32, #tpu.memory_space<vmem>>, %arg2: memref<32x64xbf16, #tpu.memory_space<vmem>>, %arg3: memref<1x64xf32, #tpu.memory_space<vmem>>, %arg4: memref<1x64xf32, #tpu.memory_space<vmem>>, %arg5: memref<8x32xf32, #tpu.memory_space<vmem>>, %arg6: memref<8x8xf32, #tpu.memory_space<vmem>>) attributes {dimension_semantics = [#tpu.dimension_semantics<parallel>], iteration_bounds = array<i64: 1>, scalar_prefetch = 0 : i64, scratch_operands = 0 : i64, tpu.core_type = #tpu.core_type<tc>, window_params = [{transform_indices = @transform_0, window_bounds = array<i64: 8, 8, 32>}, {pipeline_mode = #tpu.pipeline_mode<synchronous>, transform_indices = @transform_1, window_bounds = array<i64: 32, 64>}, {pipeline_mode = #tpu.pipeline_mode<synchronous>, transform_indices = @transform_2, window_bounds = array<i64: 1, 64>}, {pipeline_mode = #tpu.pipeline_mode<synchronous>, transform_indices = @transform_3, window_bounds = array<i64: 1, 64>}, {transform_indices = @transform_4, window_bounds = array<i64: 8, 32>}, {transform_indices = @transform_5, window_bounds = array<i64: 8, 8>}]} {
    %c0 = arith.constant 0 : index
    %c0_0 = arith.constant 0 : index
    %c0_1 = arith.constant 0 : index
    %0 = vector.load %arg1[%c0, %c0_0, %c0_1] : memref<8x8x32xf32, #tpu.memory_space<vmem>>, vector<8x8x32xf32>
    %1 = vector.shape_cast %0 : vector<8x8x32xf32> to vector<64x32xf32>
    %2 = arith.truncf %1 : vector<64x32xf32> to vector<64x32xbf16>
    %c0_2 = arith.constant 0 : index
    %c0_3 = arith.constant 0 : index
    %3 = vector.load %arg2[%c0_2, %c0_3] : memref<32x64xbf16, #tpu.memory_space<vmem>>, vector<32x64xbf16>
    %cst = arith.constant dense<0.000000e+00> : vector<64x64xf32>
    %4 = tpu.matmul %2, %3, %cst {dimension_numbers = #tpu.dot_dimension_numbers<[1], [0], [0], [1], [0, 0, 1, 1], [], []>} : vector<64x32xbf16>, vector<32x64xbf16>, vector<64x64xf32> -> vector<64x64xf32>
    %c0_4 = arith.constant 0 : index
    %c0_5 = arith.constant 0 : index
    %5 = vector.load %arg3[%c0_4, %c0_5] : memref<1x64xf32, #tpu.memory_space<vmem>>, vector<1x64xf32>
    %6 = vector.broadcast %5 : vector<1x64xf32> to vector<64x64xf32>
    %7 = arith.addf %4, %6 : vector<64x64xf32>
    %cst_6 = arith.constant 0.000000e+00 : f32
    %8 = vector.broadcast %cst_6 : f32 to vector<64x64xf32>
    %9 = arith.maximumf %7, %8 : vector<64x64xf32>
    %10 = vector.shape_cast %9 : vector<64x64xf32> to vector<8x8x64xf32>
    %c0_7 = arith.constant 0 : index
    %c0_8 = arith.constant 0 : index
    %11 = vector.load %arg4[%c0_7, %c0_8] : memref<1x64xf32, #tpu.memory_space<vmem>>, vector<1x64xf32>
    %12 = vector.shape_cast %11 : vector<1x64xf32> to vector<1x1x64xf32>
    %13 = vector.broadcast %12 : vector<1x1x64xf32> to vector<8x8x64xf32>
    %14 = arith.mulf %10, %13 : vector<8x8x64xf32>
    %cst_9 = arith.constant dense<0.000000e+00> : vector<8x8xf32>
    %15 = vector.multi_reduction <add>, %14, %cst_9 [2] : vector<8x8x64xf32> to vector<8x8xf32>
    %cst_10 = arith.constant dense<0xFF800000> : vector<8xf32>
    %16 = vector.multi_reduction <maximumf>, %15, %cst_10 [1] : vector<8x8xf32> to vector<8xf32>
    %17 = vector.shape_cast %16 : vector<8xf32> to vector<8x1xf32>
    %18 = vector.broadcast %17 : vector<8x1xf32> to vector<8x8xf32>
    %19 = arith.subf %15, %18 : vector<8x8xf32>
    %20 = math.exp %19 : vector<8x8xf32>
    %cst_11 = arith.constant dense<0.000000e+00> : vector<8xf32>
    %21 = vector.multi_reduction <add>, %20, %cst_11 [1] : vector<8x8xf32> to vector<8xf32>
    %22 = vector.shape_cast %21 : vector<8xf32> to vector<8x1xf32>
    %23 = vector.broadcast %22 : vector<8x1xf32> to vector<8x8xf32>
    %24 = arith.divf %20, %23 : vector<8x8xf32>
    %c0_12 = arith.constant 0 : index
    %c0_13 = arith.constant 0 : index
    %c0_14 = arith.constant 0 : index
    %25 = vector.load %arg1[%c0_12, %c0_13, %c0_14] : memref<8x8x32xf32, #tpu.memory_space<vmem>>, vector<8x8x32xf32>
    %26 = vector.shape_cast %24 : vector<8x8xf32> to vector<8x8x1xf32>
    %27 = vector.broadcast %26 : vector<8x8x1xf32> to vector<8x8x32xf32>
    %28 = arith.mulf %25, %27 : vector<8x8x32xf32>
    %cst_15 = arith.constant dense<0.000000e+00> : vector<8x32xf32>
    %29 = vector.multi_reduction <add>, %28, %cst_15 [1] : vector<8x8x32xf32> to vector<8x32xf32>
    %c0_16 = arith.constant 0 : index
    %c0_17 = arith.constant 0 : index
    %30 = vector.load %arg5[%c0_16, %c0_17] : memref<8x32xf32, #tpu.memory_space<vmem>>, vector<8x32xf32>
    tpu.vector_store %arg5[%c0_16, %c0_17], %29 {strides = array<i32>} : memref<8x32xf32, #tpu.memory_space<vmem>>, vector<8x32xf32>,
    %c0_18 = arith.constant 0 : index
    %c0_19 = arith.constant 0 : index
    %31 = vector.load %arg6[%c0_18, %c0_19] : memref<8x8xf32, #tpu.memory_space<vmem>>, vector<8x8xf32>
    tpu.vector_store %arg6[%c0_18, %c0_19], %24 {strides = array<i32>} : memref<8x8xf32, #tpu.memory_space<vmem>>, vector<8x8xf32>,
    return
  }
  func.func @transform_0(%arg0: i32) -> (i32, i32, i32) {
    %c0_i32 = arith.constant 0 : i32
    %c0_i32_0 = arith.constant 0 : i32
    %c0_i32_1 = arith.constant 0 : i32
    return %arg0, %c0_i32, %c0_i32_0 : i32, i32, i32
  }
  func.func @transform_1(%arg0: i32) -> (i32, i32) {
    %c0_i32 = arith.constant 0 : i32
    %c0_i32_0 = arith.constant 0 : i32
    %c0_i32_1 = arith.constant 0 : i32
    return %c0_i32, %c0_i32_0 : i32, i32
  }
  func.func @transform_2(%arg0: i32) -> (i32, i32) {
    %c0_i32 = arith.constant 0 : i32
    %c0_i32_0 = arith.constant 0 : i32
    %c0_i32_1 = arith.constant 0 : i32
    return %c0_i32, %c0_i32_0 : i32, i32
  }
  func.func @transform_3(%arg0: i32) -> (i32, i32) {
    %c0_i32 = arith.constant 0 : i32
    %c0_i32_0 = arith.constant 0 : i32
    %c0_i32_1 = arith.constant 0 : i32
    return %c0_i32, %c0_i32_0 : i32, i32
  }
  func.func @transform_4(%arg0: i32) -> (i32, i32) {
    %c0_i32 = arith.constant 0 : i32
    %c0_i32_0 = arith.constant 0 : i32
    return %arg0, %c0_i32 : i32, i32
  }
  func.func @transform_5(%arg0: i32) -> (i32, i32) {
    %c0_i32 = arith.constant 0 : i32
    %c0_i32_0 = arith.constant 0 : i32
    return %arg0, %c0_i32 : i32, i32
  }
}

</mosaic_0001>

<llo_original>
// kernel: tpu_custom_call.1
$region0: #{tpu_custom_call.1}
  #allocation0 [shape = 'u32[]', space=smem, size = 0x4, offset = 0x4, fixed_abs, tag = 'smem constant byte address 0x4 - core index']
  #allocation1 [shape = 'u32[72,128]{1,0:T(1,128)}', space=vmem, size = 0x9000, scoped, tag = 'internal scratch']
  %s0 = inlined_call_operand.hbm [shape: f32[8,8,32], index: 0, kind: input, shape index: {}]
  %s1 = inlined_call_operand.hbm [shape: bf16[32,64], index: 1, kind: input, shape index: {}]
  %s2 = inlined_call_operand.vmem [shape: f32[1,64], index: 2, kind: input, shape index: {}]
  %s3 = inlined_call_operand.vmem [shape: f32[1,64], index: 3, kind: input, shape index: {}]
  %s4 = inlined_call_operand.hbm [shape: f32[8,32], index: 4, kind: output, shape index: {0}]
  %s5 = inlined_call_operand.hbm [shape: f32[8,8], index: 5, kind: output, shape index: {1}]
  %6 = xla_tuple %s4, %s5
  %s7 = sld [smem:[#allocation0]]
  $region42: #{tpu_custom_call.1} parent=0
    _
  %s9 = ssub.s32 1, %s7
  %s10 = scalar_select 0, %s9, %s7
  $region1: #{tpu_custom_call.1} parent=0
    #allocation2 [shape = 'u8[32768]{0}', space=vmem, size = 0x8000, scoped, tag = 'input window, operand 0, single buffered']
    #allocation3 [shape = 's32[1]{0}', space=sflag, size = 0x4, scoped, tag = 'scoped memory for tpu_custom_call.1']
    #allocation4 [shape = 's32[1]{0}', space=sflag, size = 0x4, scoped, tag = 'scoped memory for tpu_custom_call.1']
    #allocation5 [shape = 'u8[8192]{0}', space=vmem, size = 0x2000, scoped, tag = 'input window, operand 1, single buffered']
    #allocation6 [shape = 's32[1]{0}', space=sflag, size = 0x4, scoped, tag = 'scoped memory for tpu_custom_call.1']
    #allocation7 [shape = 'u8[4096]{0}', space=vmem, size = 0x1000, scoped, tag = 'output window, operand 0, single buffered']
    #allocation8 [shape = 'u8[4096]{0}', space=vmem, size = 0x1000, scoped, tag = 'output window, operand 1, single buffered']
    #allocation9 [shape = 's32[1]{0}', space=sflag, size = 0x4, scoped, tag = 'scoped memory for tpu_custom_call.1']
    %11 = vsyncpa [#allocation3], 0
    %12 = vsyncpa [#allocation6], 0
    %13 = vsyncpa [#allocation4], 0
    %14 = vsyncpa [#allocation9], 0
    // Predicated region
    $region2: #{tpu_custom_call.1} parent=1 // pred_check
      _
    $region3: #{tpu_custom_call.1} parent=1 // pred_check_branch
      %16 = sbr.rel (0) target = $region5
    $region4: #{tpu_custom_call.1} parent=1 // pred_region
      %18 = vsyncadd [#allocation3], 0
      %s19 = sshll.u32 %s0, 4
      %s20 = int_to_ptr.hbm [resolvable:$true] %s19
      %s21 = sshll.u32 [#allocation2], 4
      %s22 = int_to_ptr.vmem [resolvable:$true] %s21
      %27 = dma.hbm_to_vmem [thread:$0]  %s20, 1024, %s22, [#allocation3], 128, 128, 8
    $region5: #{tpu_custom_call.1} parent=1 // pred_fallthru
      _
    // Predicated region
    $region6: #{tpu_custom_call.1} parent=1 // pred_check
      _
    $region7: #{tpu_custom_call.1} parent=1 // pred_check_branch
      %29 = sbr.rel (0) target = $region9
    $region8: #{tpu_custom_call.1} parent=1 // pred_region
      %31 = vsyncadd [#allocation6], 0
      %s32 = sshll.u32 %s1, 4
      %s33 = int_to_ptr.hbm [resolvable:$true] %s32
      %s34 = sshll.u32 [#allocation5], 4
      %s35 = int_to_ptr.vmem [resolvable:$true] %s34
      %40 = dma.hbm_to_vmem [thread:$0]  %s33, 256, %s35, [#allocation6], 64, 64, 4
    $region9: #{tpu_custom_call.1} parent=1 // pred_fallthru
      _
    // Predicated region
    $region10: #{tpu_custom_call.1} parent=1 // pred_check
      _
    $region11: #{tpu_custom_call.1} parent=1 // pred_check_branch
      %42 = sbr.rel (0) target = $region13
    $region12: #{tpu_custom_call.1} parent=1 // pred_region
      _
    $region13: #{tpu_custom_call.1} parent=1 // pred_fallthru
      _
    // Predicated region
    $region14: #{tpu_custom_call.1} parent=1 // pred_check
      _
    $region15: #{tpu_custom_call.1} parent=1 // pred_check_branch
      %44 = sbr.rel (0) target = $region17
    $region16: #{tpu_custom_call.1} parent=1 // pred_region
      _
    $region17: #{tpu_custom_call.1} parent=1 // pred_fallthru
      _
    // Predicated region
    $region18: #{tpu_custom_call.1} parent=1 // pred_check
      _
    $region19: #{tpu_custom_call.1} parent=1 // pred_check_branch
      %46 = sbr.rel (0) target = $region21
    $region20: #{tpu_custom_call.1} parent=1 // pred_region
      %48 = dma.done [#allocation3], 1024
    $region21: #{tpu_custom_call.1} parent=1 // pred_fallthru
      _
    // Predicated region
    $region22: #{tpu_custom_call.1} parent=1 // pred_check
      _
    $region23: #{tpu_custom_call.1} parent=1 // pred_check_branch
      %50 = sbr.rel (0) target = $region25
    $region24: #{tpu_custom_call.1} parent=1 // pred_region
      %52 = dma.done [#allocation6], 256
    $region25: #{tpu_custom_call.1} parent=1 // pred_fallthru
      _
    %v54 = vld [vmem:[#allocation2] sm:$0xff]
    %v55 = vld [vmem:[#allocation2 + $0x8] sm:$0xff]
    %v56 = vld [vmem:[#allocation2 + $0x10] sm:$0xff]
    %v57 = vld [vmem:[#allocation2 + $0x18] sm:$0xff]
    %v58 = vld [vmem:[#allocation2 + $0x20] sm:$0xff]
    %v59 = vld [vmem:[#allocation2 + $0x28] sm:$0xff]
    %v60 = vld [vmem:[#allocation2 + $0x30] sm:$0xff]
    %v61 = vld [vmem:[#allocation2 + $0x38] sm:$0xff]
    %v62 = vpack.c.bf16 %v55, %v54
    %v63 = vpack.c.bf16 %v57, %v56
    %v64 = vpack.c.bf16 %v59, %v58
    %v65 = vpack.c.bf16 %v61, %v60
    %v66 = vld [vmem:[#allocation5] sm:$0xf]
    %v67 = vld [vmem:[#allocation5 + $0x4] sm:$0xf]
    %v68 = vld [vmem:[#allocation5 + $0x8] sm:$0xf]
    %v69 = vld [vmem:[#allocation5 + $0xc] sm:$0xf]
    %v70 = vld [vmem:[%s2] sm:$0x1]
    %v72 = vperm.slane %v70, 0
    %v78 = vunpack.c.l.b16 %v66
    %v79 = vunpack.c.l.b16 %v67
    %v80 = vunpack.c.l.b16 %v68
    %v81 = vunpack.c.l.b16 %v69
    %v82 = vpack.c.b16 %v79, %v78
    %v83 = vpack.c.b16 %v81, %v80
    %vm86 = vcmask 261120
    %v88 = vsel %vm86, %v62, 0
    %v91 = vsel %vm86, %v63, 0
    %v94 = vsel %vm86, %v64, 0
    %v97 = vsel %vm86, %v65, 0
    %99 = vmatpush.bf16.msra.mxu0 0
    %100 = vmatpush.bf16.msra.mxu0 0
    %101 = vmatpush.bf16.msra.mxu0 0
    %102 = vmatpush.bf16.msra.mxu0 0
    %103 = vmatpush.bf16.msra.mxu0 0
    %104 = vmatpush.bf16.msra.mxu0 0
    %105 = vmatpush.bf16.msra.mxu0 %v83
    %106 = vmatpush.bf16.msra.mxu0 %v82
    %107 = vmatmul.bf16.gmra.mxu0 %v88
    %v108 = vpop.f32.mrf.mxu0
    %v109 = vadd.f32 %v72, %v108
    %v110 = vpop.f32.mrf.mxu0
    %v111 = vadd.f32 %v72, %v110
    %112 = vmatmul.bf16.gmra.mxu0 %v91
    %v113 = vpop.f32.mrf.mxu0
    %v114 = vadd.f32 %v72, %v113
    %v115 = vpop.f32.mrf.mxu0
    %v116 = vadd.f32 %v72, %v115
    %117 = vmatmul.bf16.gmra.mxu0 %v94
    %v118 = vpop.f32.mrf.mxu0
    %v119 = vadd.f32 %v72, %v118
    %v120 = vpop.f32.mrf.mxu0
    %v121 = vadd.f32 %v72, %v120
    %122 = vmatmul.bf16.gmra.mxu0 %v97
    %v123 = vpop.f32.mrf.mxu0
    %v124 = vadd.f32 %v72, %v123
    %v125 = vpop.f32.mrf.mxu0
    %v126 = vadd.f32 %v72, %v125
    %127 = vdwg.mxu0
    %v128 = vmax.f32 %v109, 0.0
    %v129 = vmax.f32 %v111, 0.0
    %v130 = vmax.f32 %v114, 0.0
    %v131 = vmax.f32 %v116, 0.0
    %v132 = vmax.f32 %v119, 0.0
    %v133 = vmax.f32 %v121, 0.0
    %v134 = vmax.f32 %v124, 0.0
    %v135 = vmax.f32 %v126, 0.0
    %v136 = vld [vmem:[%s3] sm:$0x1]
    %v138 = vperm.slane %v136, 0
    %v140 = vmul.f32 %v128, %v138
    %v141 = vmul.f32 %v129, %v138
    %v142 = vmul.f32 %v130, %v138
    %v143 = vmul.f32 %v131, %v138
    %v144 = vmul.f32 %v132, %v138
    %v145 = vmul.f32 %v133, %v138
    %v146 = vmul.f32 %v134, %v138
    %v147 = vmul.f32 %v135, %v138
    %vm148 = vcmask 523264
    %v149 = vsel %vm148, %v140, 0.0
    %150 = vadd.xlane.f32.xlu0 %v149
    %v151 = vpop.xlane.xlu0 %150
    %v152 = vsel %vm148, %v141, 0.0
    %153 = vadd.xlane.f32.xlu0 %v152
    %v154 = vpop.xlane.xlu0 %153
    %v155 = vsel %vm148, %v142, 0.0
    %156 = vadd.xlane.f32.xlu0 %v155
    %v157 = vpop.xlane.xlu0 %156
    %v158 = vsel %vm148, %v143, 0.0
    %159 = vadd.xlane.f32.xlu0 %v158
    %v160 = vpop.xlane.xlu0 %159
    %v161 = vsel %vm148, %v144, 0.0
    %162 = vadd.xlane.f32.xlu0 %v161
    %v163 = vpop.xlane.xlu0 %162
    %v164 = vsel %vm148, %v145, 0.0
    %165 = vadd.xlane.f32.xlu0 %v164
    %v166 = vpop.xlane.xlu0 %165
    %v167 = vsel %vm148, %v146, 0.0
    %168 = vadd.xlane.f32.xlu0 %v167
    %v169 = vpop.xlane.xlu0 %168
    %v170 = vsel %vm148, %v147, 0.0
    %171 = vadd.xlane.f32.xlu0 %v170
    %v172 = vpop.xlane.xlu0 %171
    %v181 = vlaneseq
    %v182 = vand.u32 %v181, 127
    %v183 = vperm.slane %v151, %v182
    %v184 = vperm.slane %v154, %v182
    %v185 = vperm.slane %v157, %v182
    %v186 = vperm.slane %v160, %v182
    %v187 = vperm.slane %v163, %v182
    %v188 = vperm.slane %v166, %v182
    %v189 = vperm.slane %v169, %v182
    %v190 = vperm.slane %v172, %v182
    %vm191 = vcmask 1041409
    %v192 = vsel %vm191, %v184, %v183
    %vm193 = vcmask 1042434
    %v194 = vsel %vm193, %v185, %v192
    %vm195 = vcmask 1043459
    %v196 = vsel %vm195, %v186, %v194
    %vm197 = vcmask 1044484
    %v198 = vsel %vm197, %v187, %v196
    %vm199 = vcmask 1045509
    %v200 = vsel %vm199, %v188, %v198
    %vm201 = vcmask 1046534
    %v202 = vsel %vm201, %v189, %v200
    %vm203 = vcmask 1047559
    %v204 = vsel %vm203, %v190, %v202
    %vm206 = vcmask 64512
    %v207 = vsel %vm206, %v204, -inf
    %208 = vmax.xlane.f32.xlu0 %v207
    %v209 = vpop.xlane.xlu0 %208
    %v211 = vperm.slane %v209, 0
    %v212 = vperm.slane %v209, 1
    %v213 = vperm.slane %v209, 2
    %v214 = vperm.slane %v209, 3
    %v215 = vperm.slane %v209, 4
    %v216 = vperm.slane %v209, 5
    %v217 = vperm.slane %v209, 6
    %v218 = vperm.slane %v209, 7
    %v227 = vsub.f32 %v151, %v211
    %v228 = vsub.f32 %v154, %v212
    %v229 = vsub.f32 %v157, %v213
    %v230 = vsub.f32 %v160, %v214
    %v231 = vsub.f32 %v163, %v215
    %v232 = vsub.f32 %v166, %v216
    %v233 = vsub.f32 %v169, %v217
    %v234 = vsub.f32 %v172, %v218
    %v235 = vmul.f32 %v227, 1.442695
    %v236 = vpow.pop %v235
    %v237 = vmul.f32 %v228, 1.442695
    %v238 = vpow.pop %v237
    %v239 = vmul.f32 %v229, 1.442695
    %v240 = vpow.pop %v239
    %v241 = vmul.f32 %v230, 1.442695
    %v242 = vpow.pop %v241
    %v243 = vmul.f32 %v231, 1.442695
    %v244 = vpow.pop %v243
    %v245 = vmul.f32 %v232, 1.442695
    %v246 = vpow.pop %v245
    %v247 = vmul.f32 %v233, 1.442695
    %v248 = vpow.pop %v247
    %v249 = vmul.f32 %v234, 1.442695
    %v250 = vpow.pop %v249
    %259 = vset.pattern.permute.xlu0 0
    %260 = vperm.xlu0 %259, %v236
    %v261 = vpop.permute.xlu0 %260
    %262 = vset.pattern.permute.xlu0 0
    %263 = vperm.xlu0 %262, %v238
    %v264 = vpop.permute.xlu0 %263
    %265 = vset.pattern.permute.xlu0 0
    %266 = vperm.xlu0 %265, %v240
    %v267 = vpop.permute.xlu0 %266
    %268 = vset.pattern.permute.xlu0 0
    %269 = vperm.xlu0 %268, %v242
    %v270 = vpop.permute.xlu0 %269
    %271 = vset.pattern.permute.xlu0 0
    %272 = vperm.xlu0 %271, %v244
    %v273 = vpop.permute.xlu0 %272
    %274 = vset.pattern.permute.xlu0 0
    %275 = vperm.xlu0 %274, %v246
    %v276 = vpop.permute.xlu0 %275
    %277 = vset.pattern.permute.xlu0 0
    %278 = vperm.xlu0 %277, %v248
    %v279 = vpop.permute.xlu0 %278
    %280 = vset.pattern.permute.xlu0 0
    %281 = vperm.xlu0 %280, %v250
    %v282 = vpop.permute.xlu0 %281
    %v283 = vperm.slane %v261, %v182
    %v284 = vperm.slane %v264, %v182
    %v285 = vperm.slane %v267, %v182
    %v286 = vperm.slane %v270, %v182
    %v287 = vperm.slane %v273, %v182
    %v288 = vperm.slane %v276, %v182
    %v289 = vperm.slane %v279, %v182
    %v290 = vperm.slane %v282, %v182
    %v291 = vsel %vm191, %v284, %v283
    %v292 = vsel %vm193, %v285, %v291
    %v293 = vsel %vm195, %v286, %v292
    %v294 = vsel %vm197, %v287, %v293
    %v295 = vsel %vm199, %v288, %v294
    %v296 = vsel %vm201, %v289, %v295
    %v297 = vsel %vm203, %v290, %v296
    %v299 = vsel %vm206, %v297, 0.0
    %300 = vadd.xlane.f32.xlu0 %v299
    %v301 = vpop.xlane.xlu0 %300
    %v303 = vperm.slane %v301, 0
    %v304 = vperm.slane %v301, 1
    %v305 = vperm.slane %v301, 2
    %v306 = vperm.slane %v301, 3
    %v307 = vperm.slane %v301, 4
    %v308 = vperm.slane %v301, 5
    %v309 = vperm.slane %v301, 6
    %v310 = vperm.slane %v301, 7
    %v319 = vrcp.pop %v303
    %v320 = vmul.f32 %v303, %v319
    %v321 = vsub.f32 1.0, %v320
    %v322 = vmul.f32 %v319, %v321
    %v323 = vadd.f32 %v319, %v322
    %vm324 = vweird.f32 %v303
    %vm325 = vweird.f32 %v319
    %vm326 = vmor %vm324, %vm325
    %v327 = vsel %vm326, %v319, %v323
    %v328 = vand.u32 2147483647, %v303
    %vm329 = vcmp.eq.f32.partialorder %v328, 8.507059e+37
    %v330 = vand.u32 %v303, 2147483648
    %v331 = vor.u32 1.1754944e-38, %v330
    %v332 = vsel %vm329, %v331, %v327
    %v333 = vmul.f32 %v236, %v332
    %v334 = vrcp.pop %v304
    %v335 = vmul.f32 %v304, %v334
    %v336 = vsub.f32 1.0, %v335
    %v337 = vmul.f32 %v334, %v336
    %v338 = vadd.f32 %v334, %v337
    %vm339 = vweird.f32 %v304
    %vm340 = vweird.f32 %v334
    %vm341 = vmor %vm339, %vm340
    %v342 = vsel %vm341, %v334, %v338
    %v343 = vand.u32 2147483647, %v304
    %vm344 = vcmp.eq.f32.partialorder %v343, 8.507059e+37
    %v345 = vand.u32 %v304, 2147483648
    %v346 = vor.u32 1.1754944e-38, %v345
    %v347 = vsel %vm344, %v346, %v342
    %v348 = vmul.f32 %v238, %v347
    %v349 = vrcp.pop %v305
    %v350 = vmul.f32 %v305, %v349
    %v351 = vsub.f32 1.0, %v350
    %v352 = vmul.f32 %v349, %v351
    %v353 = vadd.f32 %v349, %v352
    %vm354 = vweird.f32 %v305
    %vm355 = vweird.f32 %v349
    %vm356 = vmor %vm354, %vm355
    %v357 = vsel %vm356, %v349, %v353
    %v358 = vand.u32 2147483647, %v305
    %vm359 = vcmp.eq.f32.partialorder %v358, 8.507059e+37
    %v360 = vand.u32 %v305, 2147483648
    %v361 = vor.u32 1.1754944e-38, %v360
    %v362 = vsel %vm359, %v361, %v357
    %v363 = vmul.f32 %v240, %v362
    %v364 = vrcp.pop %v306
    %v365 = vmul.f32 %v306, %v364
    %v366 = vsub.f32 1.0, %v365
    %v367 = vmul.f32 %v364, %v366
    %v368 = vadd.f32 %v364, %v367
    %vm369 = vweird.f32 %v306
    %vm370 = vweird.f32 %v364
    %vm371 = vmor %vm369, %vm370
    %v372 = vsel %vm371, %v364, %v368
    %v373 = vand.u32 2147483647, %v306
    %vm374 = vcmp.eq.f32.partialorder %v373, 8.507059e+37
    %v375 = vand.u32 %v306, 2147483648
    %v376 = vor.u32 1.1754944e-38, %v375
    %v377 = vsel %vm374, %v376, %v372
    %v378 = vmul.f32 %v242, %v377
    %v379 = vrcp.pop %v307
    %v380 = vmul.f32 %v307, %v379
    %v381 = vsub.f32 1.0, %v380
    %v382 = vmul.f32 %v379, %v381
    %v383 = vadd.f32 %v379, %v382
    %vm384 = vweird.f32 %v307
    %vm385 = vweird.f32 %v379
    %vm386 = vmor %vm384, %vm385
    %v387 = vsel %vm386, %v379, %v383
    %v388 = vand.u32 2147483647, %v307
    %vm389 = vcmp.eq.f32.partialorder %v388, 8.507059e+37
    %v390 = vand.u32 %v307, 2147483648
    %v391 = vor.u32 1.1754944e-38, %v390
    %v392 = vsel %vm389, %v391, %v387
    %v393 = vmul.f32 %v244, %v392
    %v394 = vrcp.pop %v308
    %v395 = vmul.f32 %v308, %v394
    %v396 = vsub.f32 1.0, %v395
    %v397 = vmul.f32 %v394, %v396
    %v398 = vadd.f32 %v394, %v397
    %vm399 = vweird.f32 %v308
    %vm400 = vweird.f32 %v394
    %vm401 = vmor %vm399, %vm400
    %v402 = vsel %vm401, %v394, %v398
    %v403 = vand.u32 2147483647, %v308
    %vm404 = vcmp.eq.f32.partialorder %v403, 8.507059e+37
    %v405 = vand.u32 %v308, 2147483648
    %v406 = vor.u32 1.1754944e-38, %v405
    %v407 = vsel %vm404, %v406, %v402
    %v408 = vmul.f32 %v246, %v407
    %v409 = vrcp.pop %v309
    %v410 = vmul.f32 %v309, %v409
    %v411 = vsub.f32 1.0, %v410
    %v412 = vmul.f32 %v409, %v411
    %v413 = vadd.f32 %v409, %v412
    %vm414 = vweird.f32 %v309
    %vm415 = vweird.f32 %v409
    %vm416 = vmor %vm414, %vm415
    %v417 = vsel %vm416, %v409, %v413
    %v418 = vand.u32 2147483647, %v309
    %vm419 = vcmp.eq.f32.partialorder %v418, 8.507059e+37
    %v420 = vand.u32 %v309, 2147483648
    %v421 = vor.u32 1.1754944e-38, %v420
    %v422 = vsel %vm419, %v421, %v417
    %v423 = vmul.f32 %v248, %v422
    %v424 = vrcp.pop %v310
    %v425 = vmul.f32 %v310, %v424
    %v426 = vsub.f32 1.0, %v425
    %v427 = vmul.f32 %v424, %v426
    %v428 = vadd.f32 %v424, %v427
    %vm429 = vweird.f32 %v310
    %vm430 = vweird.f32 %v424
    %vm431 = vmor %vm429, %vm430
    %v432 = vsel %vm431, %v424, %v428
    %v433 = vand.u32 2147483647, %v310
    %vm434 = vcmp.eq.f32.partialorder %v433, 8.507059e+37
    %v435 = vand.u32 %v310, 2147483648
    %v436 = vor.u32 1.1754944e-38, %v435
    %v437 = vsel %vm434, %v436, %v432
    %v438 = vmul.f32 %v250, %v437
    %440 = vset.pattern.permute.xlu0 0
    %441 = vperm.xlu0 %440, %v333
    %v442 = vpop.permute.xlu0 %441
    %445 = vset.pattern.permute.xlu0 0
    %446 = vperm.xlu0 %445, %v348
    %v447 = vpop.permute.xlu0 %446
    %450 = vset.pattern.permute.xlu0 0
    %451 = vperm.xlu0 %450, %v363
    %v452 = vpop.permute.xlu0 %451
    %455 = vset.pattern.permute.xlu0 0
    %456 = vperm.xlu0 %455, %v378
    %v457 = vpop.permute.xlu0 %456
    %460 = vset.pattern.permute.xlu0 0
    %461 = vperm.xlu0 %460, %v393
    %v462 = vpop.permute.xlu0 %461
    %465 = vset.pattern.permute.xlu0 0
    %466 = vperm.xlu0 %465, %v408
    %v467 = vpop.permute.xlu0 %466
    %470 = vset.pattern.permute.xlu0 0
    %471 = vperm.xlu0 %470, %v423
    %v472 = vpop.permute.xlu0 %471
    %475 = vset.pattern.permute.xlu0 0
    %476 = vperm.xlu0 %475, %v438
    %v477 = vpop.permute.xlu0 %476
    %v479 = vmul.f32 %v54, %v442
    %v480 = vmul.f32 %v55, %v447
    %v481 = vmul.f32 %v56, %v452
    %v482 = vmul.f32 %v57, %v457
    %v483 = vmul.f32 %v58, %v462
    %v484 = vmul.f32 %v59, %v467
    %v485 = vmul.f32 %v60, %v472
    %v486 = vmul.f32 %v61, %v477
    %v487 = vsel %vm86, %v479, 0.0
    %v488 = vrot.slane %v487, 4
    %v489 = vadd.f32 %v487, %v488
    %v490 = vrot.slane %v489, 2
    %v491 = vadd.f32 %v489, %v490
    %v492 = vrot.slane %v491, 1
    %v493 = vadd.f32 %v491, %v492
    %v494 = vsel %vm86, %v480, 0.0
    %v495 = vrot.slane %v494, 4
    %v496 = vadd.f32 %v494, %v495
    %v497 = vrot.slane %v496, 2
    %v498 = vadd.f32 %v496, %v497
    %v499 = vrot.slane %v498, 1
    %v500 = vadd.f32 %v498, %v499
    %v501 = vsel %vm86, %v481, 0.0
    %v502 = vrot.slane %v501, 4
    %v503 = vadd.f32 %v501, %v502
    %v504 = vrot.slane %v503, 2
    %v505 = vadd.f32 %v503, %v504
    %v506 = vrot.slane %v505, 1
    %v507 = vadd.f32 %v505, %v506
    %v508 = vsel %vm86, %v482, 0.0
    %v509 = vrot.slane %v508, 4
    %v510 = vadd.f32 %v508, %v509
    %v511 = vrot.slane %v510, 2
    %v512 = vadd.f32 %v510, %v511
    %v513 = vrot.slane %v512, 1
    %v514 = vadd.f32 %v512, %v513
    %v515 = vsel %vm86, %v483, 0.0
    %v516 = vrot.slane %v515, 4
    %v517 = vadd.f32 %v515, %v516
    %v518 = vrot.slane %v517, 2
    %v519 = vadd.f32 %v517, %v518
    %v520 = vrot.slane %v519, 1
    %v521 = vadd.f32 %v519, %v520
    %v522 = vsel %vm86, %v484, 0.0
    %v523 = vrot.slane %v522, 4
    %v524 = vadd.f32 %v522, %v523
    %v525 = vrot.slane %v524, 2
    %v526 = vadd.f32 %v524, %v525
    %v527 = vrot.slane %v526, 1
    %v528 = vadd.f32 %v526, %v527
    %v529 = vsel %vm86, %v485, 0.0
    %v530 = vrot.slane %v529, 4
    %v531 = vadd.f32 %v529, %v530
    %v532 = vrot.slane %v531, 2
    %v533 = vadd.f32 %v531, %v532
    %v534 = vrot.slane %v533, 1
    %v535 = vadd.f32 %v533, %v534
    %v536 = vsel %vm86, %v486, 0.0
    %v537 = vrot.slane %v536, 4
    %v538 = vadd.f32 %v536, %v537
    %v539 = vrot.slane %v538, 2
    %v540 = vadd.f32 %v538, %v539
    %v541 = vrot.slane %v540, 1
    %v542 = vadd.f32 %v540, %v541
    %v551 = vsel %vm191, %v500, %v493
    %v552 = vsel %vm193, %v507, %v551
    %v553 = vsel %vm195, %v514, %v552
    %v554 = vsel %vm197, %v521, %v553
    %v555 = vsel %vm199, %v528, %v554
    %v556 = vsel %vm201, %v535, %v555
    %v557 = vsel %vm203, %v542, %v556
    %559 = vst.msk [vmem:[#allocation7] sm:$0xff] %vm86, %v557
    %v560 = vperm.slane %v442, %v182
    %v561 = vperm.slane %v447, %v182
    %v562 = vperm.slane %v452, %v182
    %v563 = vperm.slane %v457, %v182
    %v564 = vperm.slane %v462, %v182
    %v565 = vperm.slane %v467, %v182
    %v566 = vperm.slane %v472, %v182
    %v567 = vperm.slane %v477, %v182
    %v568 = vsel %vm191, %v561, %v560
    %v569 = vsel %vm193, %v562, %v568
    %v570 = vsel %vm195, %v563, %v569
    %v571 = vsel %vm197, %v564, %v570
    %v572 = vsel %vm199, %v565, %v571
    %v573 = vsel %vm201, %v566, %v572
    %v574 = vsel %vm203, %v567, %v573
    %576 = vst.msk [vmem:[#allocation8] sm:$0xff] %vm206, %v574
    // Predicated region
    $region26: #{tpu_custom_call.1} parent=1 // pred_check
      _
    $region27: #{tpu_custom_call.1} parent=1 // pred_check_branch
      %578 = sbr.rel (0) target = $region29
    $region28: #{tpu_custom_call.1} parent=1 // pred_region
      %580 = vsyncadd [#allocation4], 0
      %s582 = sshll.u32 [#allocation7], 4
      %s583 = int_to_ptr.vmem [resolvable:$true] %s582
      %s584 = sshll.u32 %s4, 4
      %s585 = int_to_ptr.hbm [resolvable:$true] %s584
      %587 = dma.vmem_to_hbm [thread:$0]  %s583, 128, %s585, [#allocation4]
    $region29: #{tpu_custom_call.1} parent=1 // pred_fallthru
      _
    // Predicated region
    $region30: #{tpu_custom_call.1} parent=1 // pred_check
      _
    $region31: #{tpu_custom_call.1} parent=1 // pred_check_branch
      %589 = sbr.rel (0) target = $region33
    $region32: #{tpu_custom_call.1} parent=1 // pred_region
      %591 = vsyncadd [#allocation9], 0
      %s593 = sshll.u32 [#allocation8], 4
      %s594 = int_to_ptr.vmem [resolvable:$true] %s593
      %s595 = sshll.u32 %s5, 4
      %s596 = int_to_ptr.hbm [resolvable:$true] %s595
      %598 = dma.vmem_to_hbm [thread:$0]  %s594, 128, %s596, [#allocation9]
    $region33: #{tpu_custom_call.1} parent=1 // pred_fallthru
      _
    // Predicated region
    $region34: #{tpu_custom_call.1} parent=1 // pred_check
      _
    $region35: #{tpu_custom_call.1} parent=1 // pred_check_branch
      %600 = sbr.rel (0) target = $region37
    $region36: #{tpu_custom_call.1} parent=1 // pred_region
      %602 = dma.done [#allocation4], 128
    $region37: #{tpu_custom_call.1} parent=1 // pred_fallthru
      _
    // Predicated region
    $region38: #{tpu_custom_call.1} parent=1 // pred_check
      _
    $region39: #{tpu_custom_call.1} parent=1 // pred_check_branch
      %604 = sbr.rel (0) target = $region41
    $region40: #{tpu_custom_call.1} parent=1 // pred_region
      %606 = dma.done [#allocation9], 128
    $region41: #{tpu_custom_call.1} parent=1 // pred_fallthru
      _
    %607 = vsyncpa [#allocation3], 1
    %608 = vsyncpa [#allocation6], 1
    %609 = vsyncpa [#allocation4], 1
    %610 = vsyncpa [#allocation9], 1

</llo_original>
